<compile_context>
chip_gen: v7x
topology: tpu7x:2x2x1
jax: 0.10.0
libtpu: 0.0.40
codegen_flags: <defaults>
</compile_context>

<pallas_src>
import jax
import jax.numpy as jnp
from jax.experimental import pallas as pl
from jax.experimental.pallas import tpu as pltpu

# ---- module constants (from WFNL.__init__ defaults) ----
ALPHA = 0.25
GAMMA = 2.0            # realized as an explicit square below
EPS = 1e-12
IGNORE_LABEL = -1.0
LOSS_WEIGHT = 1.0      # self._weight when weight=None in __init__

# TODO(synk): the torch.no_grad() bookkeeping (self._k_sum / self._m_max EMA stats)
#             is training-monitor state, not part of the returned loss; omitted.
# TODO(synk): the optional per-pixel `weight` argument path (weight*w + (1-w)) is
#             not exercised here; only the weight=None branch is implemented.


def _round_up(x, m):
    return ((x + m - 1) // m) * m


def _wfnl_partial_kernel(pred_ref, label_ref, sw_ref, beta_ref, raw_ref):
    """Accumulate per-row partial sums over the H*W (reduction) grid axis.

    pred_ref  : (row_tile, hw_tile) logits (any float dtype)
    label_ref : (row_tile, hw_tile) int8 labels in {-1, 0, 1}
    sw_ref    : (row_tile, 1) f32   sum of sample_weight
    beta_ref  : (row_tile, 1) f32   sum of (1 - pt)^2
    raw_ref   : (row_tile, 1) f32   sum of -alpha * (1-pt)^2 * log(min(pt+eps,1)) * sw
    """
    @pl.when(pl.program_id(1) == 0)
    def _():
        sw_ref[...] = jnp.zeros_like(sw_ref)
        beta_ref[...] = jnp.zeros_like(beta_ref)
        raw_ref[...] = jnp.zeros_like(raw_ref)

    pred = pred_ref[...].astype(jnp.float32)       # logits
    label = label_ref[...].astype(jnp.float32)     # exact {-1, 0, 1}

    p = jax.nn.sigmoid(pred)                       # from_sigmoid=False
    valid = label != IGNORE_LABEL                  # sample_weight (bool)
    sw = valid.astype(jnp.float32)
    one_hot = label > 0.5

    # pt = where(valid, 1 - |label - pred|, 1);  padded/ignored pixels -> pt = 1
    pt = jnp.where(valid, 1.0 - jnp.abs(label - p), 1.0)
    d = 1.0 - pt
    beta = d * d                                   # gamma = 2 -> explicit square

    # alpha*sw * ... * sw == alpha * ... * sw for 0/1 sw, so apply sw once.
    alpha = jnp.where(one_hot, ALPHA, 1.0 - ALPHA)

    # Raw focal term; the per-(B,C) scalar mult = sw_sum/(beta_sum+eps) is applied
    # in the epilogue (it factors out of the spatial sum).
    raw = -alpha * beta * jnp.log(jnp.minimum(pt + EPS, 1.0)) * sw

    sw_ref[...] += jnp.sum(sw, axis=-1, keepdims=True)
    beta_ref[...] += jnp.sum(beta, axis=-1, keepdims=True)
    raw_ref[...] += jnp.sum(raw, axis=-1, keepdims=True)


def wfnl_loss(pred, label):
    """pred, label: (B, C, H, W). Returns per-batch loss, shape (B,) f32."""
    assert pred.shape == label.shape
    assert pred.ndim == 4, "expected NCHW input"
    B, C, H, W = pred.shape
    rows = B * C
    HW = H * W

    pred2 = pred.reshape(rows, HW)                       # keep native float dtype
    label2 = label.reshape(rows, HW).astype(jnp.int8)    # exact {-1, 0, 1}

    # ---- tile sizing (lane-dense, bounded VMEM, safe for v5e/v6e/v7x) ----
    LANE = 128
    hw_tile = min(_round_up(HW, LANE), 2048)             # <= 2048 lanes
    hw_padded = _round_up(HW, hw_tile)
    if rows <= 256:
        row_tile = rows                                  # block == full dim: always legal
        rows_padded = rows
    else:
        row_tile = 256                                   # multiple of 32 (int8-safe)
        rows_padded = _round_up(rows, row_tile)

    pad_r = rows_padded - rows
    pad_c = hw_padded - HW
    if pad_r or pad_c:
        pred2 = jnp.pad(pred2, ((0, pad_r), (0, pad_c)))
        # pad labels with the ignore value so padded pixels contribute nothing
        label2 = jnp.pad(label2, ((0, pad_r), (0, pad_c)), constant_values=-1)

    grid = (rows_padded // row_tile, hw_padded // hw_tile)

    out_shapes = (
        jax.ShapeDtypeStruct((rows_padded, 1), jnp.float32),  # sw_sum
        jax.ShapeDtypeStruct((rows_padded, 1), jnp.float32),  # beta_sum
        jax.ShapeDtypeStruct((rows_padded, 1), jnp.float32),  # raw focal sum
    )
    acc_spec = pl.BlockSpec((row_tile, 1), lambda i, k: (i, 0))

    sw_sum, beta_sum, raw_sum = pl.pallas_call(
        _wfnl_partial_kernel,
        out_shape=out_shapes,
        grid=grid,
        in_specs=[
            pl.BlockSpec((row_tile, hw_tile), lambda i, k: (i, k)),
            pl.BlockSpec((row_tile, hw_tile), lambda i, k: (i, k)),
        ],
        out_specs=(acc_spec, acc_spec, acc_spec),
        compiler_params=pltpu.CompilerParams(
            dimension_semantics=("parallel", "arbitrary"),
            vmem_limit_bytes=32 * 1024 * 1024,
        ),
    )(pred2, label2)

    # ---- tiny JAX epilogue on the (B, C) partials ----
    sw_sum = sw_sum[:rows, 0].reshape(B, C)
    beta_sum = beta_sum[:rows, 0].reshape(B, C)
    raw_sum = raw_sum[:rows, 0].reshape(B, C)

    mult = sw_sum / (beta_sum + EPS)        # detach_delimeter: forward no-op
    loss_bc = LOSS_WEIGHT * mult * raw_sum  # max_mult = -1 -> no clamp
    bsum = jnp.sum(sw_sum, axis=1)          # valid pixels per batch element
    return jnp.sum(loss_bc, axis=1) / (bsum + EPS)


def _wfnl_reference(pred, label):
    """Pure-JAX reference mirroring the PyTorch forward (weight=None path)."""
    pred = jax.nn.sigmoid(pred)
    one_hot = label > 0.5
    sw_bool = label != IGNORE_LABEL
    sw = sw_bool.astype(jnp.float32)
    alpha = jnp.where(one_hot, ALPHA * sw, (1.0 - ALPHA) * sw)
    pt = jnp.where(sw_bool, 1.0 - jnp.abs(label - pred), jnp.ones_like(pred))
    beta = (1.0 - pt) ** GAMMA
    sw_sum = jnp.sum(sw, axis=(-2, -1), keepdims=True)
    beta_sum = jnp.sum(beta, axis=(-2, -1), keepdims=True)
    mult = sw_sum / (beta_sum + EPS)
    beta = beta * mult
    loss = -alpha * beta * jnp.log(jnp.minimum(pt + EPS, 1.0))
    loss = LOSS_WEIGHT * (loss * sw)
    bsum = jnp.sum(sw, axis=(1, 2, 3))
    return jnp.sum(loss, axis=(1, 2, 3)) / (bsum + EPS)


if __name__ == "__main__":
    key = jax.random.PRNGKey(0)
    k_pred, k_lab, k_ign = jax.random.split(key, 3)

    B, C, H, W = 2, 4, 16, 16
    pred = jax.random.normal(k_pred, (B, C, H, W), dtype=jnp.float32)

    # labels in {0, 1}, with some pixels set to the ignore label (-1)
    label = (jax.random.uniform(k_lab, (B, C, H, W)) > 0.5).astype(jnp.float32)
    ignore_mask = jax.random.uniform(k_ign, (B, C, H, W)) < 0.1
    label = jnp.where(ignore_mask, jnp.float32(IGNORE_LABEL), label)

    out = jax.block_until_ready(wfnl_loss(pred, label))
    ref = jax.block_until_ready(_wfnl_reference(pred, label))

    assert out.shape == (B,)
    assert jnp.allclose(out, ref, rtol=1e-4, atol=1e-6), (out, ref)

    print("KERNEL_OK")
</pallas_src>

<mosaic_0001>
module attributes {stable_mosaic.version = 11 : i64} {
  func.func @_wfnl_partial_kernel(%arg0: i32, %arg1: i32, %arg2: memref<8x256xf32, #tpu.memory_space<vmem>>, %arg3: memref<8x256xi8, #tpu.memory_space<vmem>>, %arg4: memref<8x1xf32, #tpu.memory_space<vmem>>, %arg5: memref<8x1xf32, #tpu.memory_space<vmem>>, %arg6: memref<8x1xf32, #tpu.memory_space<vmem>>) attributes {dimension_semantics = [#tpu.dimension_semantics<parallel>, #tpu.dimension_semantics<arbitrary>], iteration_bounds = array<i64: 1, 1>, scalar_prefetch = 0 : i64, scratch_operands = 0 : i64, tpu.core_type = #tpu.core_type<tc>, window_params = [{transform_indices = @transform_0, window_bounds = array<i64: 8, 256>}, {transform_indices = @transform_1, window_bounds = array<i64: 8, 256>}, {transform_indices = @transform_2, window_bounds = array<i64: 8, 1>}, {transform_indices = @transform_3, window_bounds = array<i64: 8, 1>}, {transform_indices = @transform_4, window_bounds = array<i64: 8, 1>}]} {
    %c0_i32 = arith.constant 0 : i32
    %0 = arith.cmpi eq, %arg1, %c0_i32 : i32
    %1 = arith.extui %0 : i1 to i32
    %c0_i32_0 = arith.constant 0 : i32
    %2 = arith.cmpi ne, %1, %c0_i32_0 : i32
    scf.if %2 {
      %cst_29 = arith.constant 0.000000e+00 : f32
      %54 = vector.broadcast %cst_29 : f32 to vector<8x1xf32>
      %c0_30 = arith.constant 0 : index
      %c0_31 = arith.constant 0 : index
      %55 = vector.load %arg4[%c0_30, %c0_31] : memref<8x1xf32, #tpu.memory_space<vmem>>, vector<8x1xf32>
      tpu.vector_store %arg4[%c0_30, %c0_31], %54 {strides = array<i32>} : memref<8x1xf32, #tpu.memory_space<vmem>>, vector<8x1xf32>,
      %cst_32 = arith.constant 0.000000e+00 : f32
      %56 = vector.broadcast %cst_32 : f32 to vector<8x1xf32>
      %c0_33 = arith.constant 0 : index
      %c0_34 = arith.constant 0 : index
      %57 = vector.load %arg5[%c0_33, %c0_34] : memref<8x1xf32, #tpu.memory_space<vmem>>, vector<8x1xf32>
      tpu.vector_store %arg5[%c0_33, %c0_34], %56 {strides = array<i32>} : memref<8x1xf32, #tpu.memory_space<vmem>>, vector<8x1xf32>,
      %cst_35 = arith.constant 0.000000e+00 : f32
      %58 = vector.broadcast %cst_35 : f32 to vector<8x1xf32>
      %c0_36 = arith.constant 0 : index
      %c0_37 = arith.constant 0 : index
      %59 = vector.load %arg6[%c0_36, %c0_37] : memref<8x1xf32, #tpu.memory_space<vmem>>, vector<8x1xf32>
      tpu.vector_store %arg6[%c0_36, %c0_37], %58 {strides = array<i32>} : memref<8x1xf32, #tpu.memory_space<vmem>>, vector<8x1xf32>,
    } else {
    }
    %c0 = arith.constant 0 : index
    %c0_1 = arith.constant 0 : index
    %3 = vector.load %arg2[%c0, %c0_1] : memref<8x256xf32, #tpu.memory_space<vmem>>, vector<8x256xf32>
    %c0_2 = arith.constant 0 : index
    %c0_3 = arith.constant 0 : index
    %4 = vector.load %arg3[%c0_2, %c0_3] : memref<8x256xi8, #tpu.memory_space<vmem>>, vector<8x256xi8>
    %5 = arith.sitofp %4 : vector<8x256xi8> to vector<8x256xf32>
    %6 = arith.negf %3 : vector<8x256xf32>
    %7 = math.exp %6 : vector<8x256xf32>
    %cst = arith.constant 1.000000e+00 : f32
    %8 = vector.broadcast %cst : f32 to vector<8x256xf32>
    %9 = arith.addf %8, %7 : vector<8x256xf32>
    %10 = arith.divf %8, %9 : vector<8x256xf32>
    %cst_4 = arith.constant -1.000000e+00 : f32
    %11 = vector.broadcast %cst_4 : f32 to vector<8x256xf32>
    %12 = arith.cmpf one, %5, %11 : vector<8x256xf32>
    %13 = arith.extui %12 : vector<8x256xi1> to vector<8x256xi32>
    %14 = arith.sitofp %13 : vector<8x256xi32> to vector<8x256xf32>
    %cst_5 = arith.constant 5.000000e-01 : f32
    %15 = vector.broadcast %cst_5 : f32 to vector<8x256xf32>
    %16 = arith.cmpf ogt, %5, %15 : vector<8x256xf32>
    %17 = arith.subf %5, %10 : vector<8x256xf32>
    %18 = math.absf %17 : vector<8x256xf32>
    %cst_6 = arith.constant 1.000000e+00 : f32
    %19 = vector.broadcast %cst_6 : f32 to vector<8x256xf32>
    %20 = arith.subf %19, %18 : vector<8x256xf32>
    %cst_7 = arith.constant 1.000000e+00 : f32
    %21 = vector.broadcast %cst_7 : f32 to vector<8x256xf32>
    %22 = arith.select %12, %20, %21 : vector<8x256xi1>, vector<8x256xf32>
    %cst_8 = arith.constant 1.000000e+00 : f32
    %23 = vector.broadcast %cst_8 : f32 to vector<8x256xf32>
    %24 = arith.subf %23, %22 : vector<8x256xf32>
    %25 = arith.mulf %24, %24 : vector<8x256xf32>
    %cst_9 = arith.constant 2.500000e-01 : f32
    %cst_10 = arith.constant 7.500000e-01 : f32
    %26 = vector.broadcast %cst_9 : f32 to vector<8x256xf32>
    %27 = vector.broadcast %cst_10 : f32 to vector<8x256xf32>
    %28 = arith.select %16, %26, %27 : vector<8x256xi1>, vector<8x256xf32>
    %cst_11 = arith.constant 0.000000e+00 : f32
    %29 = vector.broadcast %cst_11 : f32 to vector<8x256xf32>
    %30 = arith.subf %29, %28 : vector<8x256xf32>
    %31 = arith.mulf %30, %25 : vector<8x256xf32>
    %cst_12 = arith.constant 9.99999996E-13 : f32
    %32 = vector.broadcast %cst_12 : f32 to vector<8x256xf32>
    %33 = arith.addf %22, %32 : vector<8x256xf32>
    %cst_13 = arith.constant 1.000000e+00 : f32
    %34 = vector.broadcast %cst_13 : f32 to vector<8x256xf32>
    %35 = arith.minimumf %33, %34 : vector<8x256xf32>
    %36 = math.log %35 : vector<8x256xf32>
    %37 = arith.mulf %31, %36 : vector<8x256xf32>
    %38 = arith.mulf %37, %14 : vector<8x256xf32>
    %c0_14 = arith.constant 0 : index
    %c0_15 = arith.constant 0 : index
    %39 = vector.load %arg4[%c0_14, %c0_15] : memref<8x1xf32, #tpu.memory_space<vmem>>, vector<8x1xf32>
    %cst_16 = arith.constant dense<0.000000e+00> : vector<8xf32>
    %40 = vector.multi_reduction <add>, %14, %cst_16 [1] : vector<8x256xf32> to vector<8xf32>
    %41 = vector.shape_cast %40 : vector<8xf32> to vector<8x1xf32>
    %42 = arith.addf %39, %41 : vector<8x1xf32>
    %c0_17 = arith.constant 0 : index
    %c0_18 = arith.constant 0 : index
    %43 = vector.load %arg4[%c0_17, %c0_18] : memref<8x1xf32, #tpu.memory_space<vmem>>, vector<8x1xf32>
    tpu.vector_store %arg4[%c0_17, %c0_18], %42 {strides = array<i32>} : memref<8x1xf32, #tpu.memory_space<vmem>>, vector<8x1xf32>,
    %c0_19 = arith.constant 0 : index
    %c0_20 = arith.constant 0 : index
    %44 = vector.load %arg5[%c0_19, %c0_20] : memref<8x1xf32, #tpu.memory_space<vmem>>, vector<8x1xf32>
    %cst_21 = arith.constant dense<0.000000e+00> : vector<8xf32>
    %45 = vector.multi_reduction <add>, %25, %cst_21 [1] : vector<8x256xf32> to vector<8xf32>
    %46 = vector.shape_cast %45 : vector<8xf32> to vector<8x1xf32>
    %47 = arith.addf %44, %46 : vector<8x1xf32>
    %c0_22 = arith.constant 0 : index
    %c0_23 = arith.constant 0 : index
    %48 = vector.load %arg5[%c0_22, %c0_23] : memref<8x1xf32, #tpu.memory_space<vmem>>, vector<8x1xf32>
    tpu.vector_store %arg5[%c0_22, %c0_23], %47 {strides = array<i32>} : memref<8x1xf32, #tpu.memory_space<vmem>>, vector<8x1xf32>,
    %c0_24 = arith.constant 0 : index
    %c0_25 = arith.constant 0 : index
    %49 = vector.load %arg6[%c0_24, %c0_25] : memref<8x1xf32, #tpu.memory_space<vmem>>, vector<8x1xf32>
    %cst_26 = arith.constant dense<0.000000e+00> : vector<8xf32>
    %50 = vector.multi_reduction <add>, %38, %cst_26 [1] : vector<8x256xf32> to vector<8xf32>
    %51 = vector.shape_cast %50 : vector<8xf32> to vector<8x1xf32>
    %52 = arith.addf %49, %51 : vector<8x1xf32>
    %c0_27 = arith.constant 0 : index
    %c0_28 = arith.constant 0 : index
    %53 = vector.load %arg6[%c0_27, %c0_28] : memref<8x1xf32, #tpu.memory_space<vmem>>, vector<8x1xf32>
    tpu.vector_store %arg6[%c0_27, %c0_28], %52 {strides = array<i32>} : memref<8x1xf32, #tpu.memory_space<vmem>>, vector<8x1xf32>,
    return
  }
  func.func @transform_0(%arg0: i32, %arg1: i32) -> (i32, i32) {
    %c0_i32 = arith.constant 0 : i32
    return %arg0, %arg1 : i32, i32
  }
  func.func @transform_1(%arg0: i32, %arg1: i32) -> (i32, i32) {
    %c0_i32 = arith.constant 0 : i32
    return %arg0, %arg1 : i32, i32
  }
  func.func @transform_2(%arg0: i32, %arg1: i32) -> (i32, i32) {
    %c0_i32 = arith.constant 0 : i32
    %c0_i32_0 = arith.constant 0 : i32
    return %arg0, %c0_i32 : i32, i32
  }
  func.func @transform_3(%arg0: i32, %arg1: i32) -> (i32, i32) {
    %c0_i32 = arith.constant 0 : i32
    %c0_i32_0 = arith.constant 0 : i32
    return %arg0, %c0_i32 : i32, i32
  }
  func.func @transform_4(%arg0: i32, %arg1: i32) -> (i32, i32) {
    %c0_i32 = arith.constant 0 : i32
    %c0_i32_0 = arith.constant 0 : i32
    return %arg0, %c0_i32 : i32, i32
  }
}

</mosaic_0001>

<llo_original>
// kernel: tpu_custom_call.1
$region0: #{tpu_custom_call.1}
  #allocation0 [shape = 'u32[]', space=smem, size = 0x4, offset = 0x4, fixed_abs, tag = 'smem constant byte address 0x4 - core index']
  #allocation1 [shape = 'u32[144,128]{1,0:T(1,128)}', space=vmem, size = 0x12000, scoped, tag = 'internal scratch']
  %s0 = inlined_call_operand.hbm [shape: f32[8,256], index: 0, kind: input, shape index: {}]
  %s1 = inlined_call_operand.hbm [shape: s8[8,256], index: 1, kind: input, shape index: {}]
  %s2 = inlined_call_operand.vmem [shape: f32[8,1], index: 2, kind: output, shape index: {0}]
  %s3 = inlined_call_operand.vmem [shape: f32[8,1], index: 3, kind: output, shape index: {1}]
  %s4 = inlined_call_operand.vmem [shape: f32[8,1], index: 4, kind: output, shape index: {2}]
  %5 = xla_tuple %s2, %s3, %s4
  %s6 = sld [smem:[#allocation0]]
  $region46: #{tpu_custom_call.1} parent=0
    _
  %s8 = ssub.s32 1, %s6
  %s9 = scalar_select 0, %s8, %s6
  $region1: #{tpu_custom_call.1} parent=0
    #allocation2 [shape = 'u8[8192]{0}', space=vmem, size = 0x2000, scoped, tag = 'input window, operand 0, single buffered']
    #allocation3 [shape = 's32[1]{0}', space=sflag, size = 0x4, scoped, tag = 'scoped memory for tpu_custom_call.1']
    #allocation4 [shape = 'u8[2048]{0}', space=vmem, size = 0x800, scoped, tag = 'input window, operand 1, single buffered']
    #allocation5 [shape = 's32[1]{0}', space=sflag, size = 0x4, scoped, tag = 'scoped memory for tpu_custom_call.1']
    %10 = vsyncpa [#allocation3], 0
    %11 = vsyncpa [#allocation5], 0
    // Predicated region
    $region2: #{tpu_custom_call.1} parent=1 // pred_check
      _
    $region3: #{tpu_custom_call.1} parent=1 // pred_check_branch
      %13 = sbr.rel (0) target = $region5
    $region4: #{tpu_custom_call.1} parent=1 // pred_region
      %s15 = ssub.s32 256, 256
      %16 = vsyncadd [#allocation3], %s15
      %s18 = sshll.u32 [#allocation2], 4
      %s19 = int_to_ptr.vmem [resolvable:$true] %s18
      %21 = dma.hbm_to_vmem [thread:$0]  %s0, 256, %s19, [#allocation3]
    $region5: #{tpu_custom_call.1} parent=1 // pred_fallthru
      _
    // Predicated region
    $region6: #{tpu_custom_call.1} parent=1 // pred_check
      _
    $region7: #{tpu_custom_call.1} parent=1 // pred_check_branch
      %23 = sbr.rel (0) target = $region9
    $region8: #{tpu_custom_call.1} parent=1 // pred_region
      %s25 = ssub.s32 64, 64
      %26 = vsyncadd [#allocation5], %s25
      %s28 = sshll.u32 [#allocation4], 4
      %s29 = int_to_ptr.vmem [resolvable:$true] %s28
      %31 = dma.hbm_to_vmem [thread:$0]  %s1, 64, %s29, [#allocation5]
    $region9: #{tpu_custom_call.1} parent=1 // pred_fallthru
      _
    // Predicated region
    $region10: #{tpu_custom_call.1} parent=1 // pred_check
      _
    $region11: #{tpu_custom_call.1} parent=1 // pred_check_branch
      %33 = sbr.rel (0) target = $region13
    $region12: #{tpu_custom_call.1} parent=1 // pred_region
      %34 = dma.done [#allocation3], 256
    $region13: #{tpu_custom_call.1} parent=1 // pred_fallthru
      _
    // Predicated region
    $region14: #{tpu_custom_call.1} parent=1 // pred_check
      _
    $region15: #{tpu_custom_call.1} parent=1 // pred_check_branch
      %36 = sbr.rel (0) target = $region17
    $region16: #{tpu_custom_call.1} parent=1 // pred_region
      %37 = dma.done [#allocation5], 64
    $region17: #{tpu_custom_call.1} parent=1 // pred_fallthru
      _
    %p38 = scmp.eq.s32.totalorder 0, 0
    // Predicated region
    $region18: #{tpu_custom_call.1} parent=1 // pred_check
      %p39 = pneg %p38
    $region19: #{tpu_custom_call.1} parent=1 // pred_check_branch
      %41 = sbr.rel (%p39) target = $region21
    $region20: #{tpu_custom_call.1} parent=1 // pred_region
      %vm42 = vcmask 7168
      %43 = vst.msk [vmem:[%s2] sm:$0xff] %vm42, 0.0
      %44 = vst.msk [vmem:[%s3] sm:$0xff] %vm42, 0.0
      %45 = vst.msk [vmem:[%s4] sm:$0xff] %vm42, 0.0
    $region21: #{tpu_custom_call.1} parent=1 // pred_fallthru
      _
    %v46 = vld [vmem:[#allocation2] sm:$0xff]
    %v47 = vld [vmem:[#allocation2 + $0x8] sm:$0xff]
    %v48 = vld [vmem:[#allocation4] sm:$0xf]
    %v49 = vunpack.c.0.s8 %v48
    %v50 = vunpack.c.1.s8 %v48
    %v51 = vcvt.s32.f32 %v49
    %v52 = vcvt.s32.f32 %v50
    %v53 = vxor.u32 %v46, 2147483648
    %v54 = vxor.u32 %v47, 2147483648
    %v55 = vmul.f32 %v53, 1.442695
    %v56 = vpow.pop %v55
    %v57 = vmul.f32 %v54, 1.442695
    %v58 = vpow.pop %v57
    %v59 = vadd.f32 %v56, 1.0
    %v60 = vadd.f32 %v58, 1.0
    %v61 = vrcp.pop %v59
    %v62 = vmul.f32 1.0, %v61
    %v63 = vrcp.pop %v60
    %v64 = vmul.f32 1.0, %v63
    %vm65 = vcmp.ne.f32.partialorder %v51, -1.0
    %vm66 = vcmp.ne.f32.partialorder %v52, -1.0
    %v67 = vsel %vm65, 1, 0
    %v68 = vsel %vm66, 1, 0
    %v69 = vcvt.s32.f32 %v67
    %v70 = vcvt.s32.f32 %v68
    %vm71 = vcmp.gt.f32.partialorder %v51, 0.5
    %vm72 = vcmp.gt.f32.partialorder %v52, 0.5
    %v73 = vsub.f32 %v51, %v62
    %v74 = vsub.f32 %v52, %v64
    %v75 = vand.u32 2147483647, %v73
    %v76 = vand.u32 2147483647, %v74
    %v77 = vsub.f32 1.0, %v75
    %v78 = vsub.f32 1.0, %v76
    %v79 = vsel %vm65, %v77, 1.0
    %v80 = vsel %vm66, %v78, 1.0
    %v81 = vsub.f32 1.0, %v79
    %v82 = vsub.f32 1.0, %v80
    %v83 = vmul.f32 %v81, %v81
    %v84 = vmul.f32 %v82, %v82
    %v85 = vsel %vm71, 0.25, 0.75
    %v86 = vsel %vm72, 0.25, 0.75
    %v87 = vsub.f32 0.0, %v85
    %v88 = vsub.f32 0.0, %v86
    %v89 = vmul.f32 %v87, %v83
    %v90 = vmul.f32 %v88, %v84
    %v91 = vadd.f32 %v79, 1e-12
    %v92 = vadd.f32 %v80, 1e-12
    %v93 = vmin.f32 %v91, 1.0
    %v94 = vmin.f32 %v92, 1.0
    %v95 = vlog2.pop %v93
    %v96 = vmul.f32 %v95, 0.6931472
    %v97 = vlog2.pop %v94
    %v98 = vmul.f32 %v97, 0.6931472
    %v99 = vmul.f32 %v89, %v96
    %v100 = vmul.f32 %v90, %v98
    %v101 = vmul.f32 %v99, %v69
    %v102 = vmul.f32 %v100, %v70
    %v103 = vld [vmem:[%s2] sm:$0xff]
    %v104 = vadd.f32 %v69, %v70
    %105 = vadd.xlane.f32.xlu0 %v104
    %v106 = vpop.xlane.xlu0 %105
    %v107 = vadd.f32 %v103, %v106
    %vm108 = vcmask 7168
    %109 = vst.msk [vmem:[%s2] sm:$0xff] %vm108, %v107
    %v110 = vld [vmem:[%s3] sm:$0xff]
    %v111 = vadd.f32 %v83, %v84
    %112 = vadd.xlane.f32.xlu0 %v111
    %v113 = vpop.xlane.xlu0 %112
    %v114 = vadd.f32 %v110, %v113
    %115 = vst.msk [vmem:[%s3] sm:$0xff] %vm108, %v114
    %v116 = vld [vmem:[%s4] sm:$0xff]
    %v117 = vadd.f32 %v101, %v102
    %118 = vadd.xlane.f32.xlu0 %v117
    %v119 = vpop.xlane.xlu0 %118
    %v120 = vadd.f32 %v116, %v119
    %121 = vst.msk [vmem:[%s4] sm:$0xff] %vm108, %v120
    // Predicated region
    $region22: #{tpu_custom_call.1} parent=1 // pred_check
      _
    $region23: #{tpu_custom_call.1} parent=1 // pred_check_branch
      %123 = sbr.rel (0) target = $region25
    $region24: #{tpu_custom_call.1} parent=1 // pred_region
      _
    $region25: #{tpu_custom_call.1} parent=1 // pred_fallthru
      _
    // Predicated region
    $region26: #{tpu_custom_call.1} parent=1 // pred_check
      _
    $region27: #{tpu_custom_call.1} parent=1 // pred_check_branch
      %125 = sbr.rel (0) target = $region29
    $region28: #{tpu_custom_call.1} parent=1 // pred_region
      _
    $region29: #{tpu_custom_call.1} parent=1 // pred_fallthru
      _
    // Predicated region
    $region30: #{tpu_custom_call.1} parent=1 // pred_check
      _
    $region31: #{tpu_custom_call.1} parent=1 // pred_check_branch
      %127 = sbr.rel (0) target = $region33
    $region32: #{tpu_custom_call.1} parent=1 // pred_region
      _
    $region33: #{tpu_custom_call.1} parent=1 // pred_fallthru
      _
    // Predicated region
    $region34: #{tpu_custom_call.1} parent=1 // pred_check
      _
    $region35: #{tpu_custom_call.1} parent=1 // pred_check_branch
      %129 = sbr.rel (0) target = $region37
    $region36: #{tpu_custom_call.1} parent=1 // pred_region
      _
    $region37: #{tpu_custom_call.1} parent=1 // pred_fallthru
      _
    // Predicated region
    $region38: #{tpu_custom_call.1} parent=1 // pred_check
      _
    $region39: #{tpu_custom_call.1} parent=1 // pred_check_branch
      %131 = sbr.rel (0) target = $region41
    $region40: #{tpu_custom_call.1} parent=1 // pred_region
      _
    $region41: #{tpu_custom_call.1} parent=1 // pred_fallthru
      _
    // Predicated region
    $region42: #{tpu_custom_call.1} parent=1 // pred_check
      _
    $region43: #{tpu_custom_call.1} parent=1 // pred_check_branch
      %133 = sbr.rel (0) target = $region45
    $region44: #{tpu_custom_call.1} parent=1 // pred_region
      _
    $region45: #{tpu_custom_call.1} parent=1 // pred_fallthru
      _
    %134 = vsyncpa [#allocation3], 1
    %135 = vsyncpa [#allocation5], 1

</llo_original>
